<compile_context>
chip_gen: v5e
topology: v5e:2x2
jax: 0.10.0
libtpu: 0.0.40
codegen_flags: <defaults>
</compile_context>

<pallas_src>
import jax
import jax.numpy as jnp
from jax.experimental import pallas as pl
from jax.experimental.pallas import tpu as pltpu

# Only bother splitting the copy into several in-flight DMAs once the buffer is
# large enough for descriptor-issue latency to matter at all.
_MIN_BYTES_PER_DMA = 8 * 1024 * 1024
_MAX_INFLIGHT_DMAS = 8


def _build_chunks(leading: int, ndim: int, total_bytes: int):
    """Static (start, size) slices along axis 0 for the in-flight DMAs.

    Multi-chunk only for large >=3-D inputs (leading axis is untiled there, so
    arbitrary slice starts are layout-clean).  Everything else: one full-ref DMA.
    """
    if ndim < 3 or leading <= 1 or total_bytes < 2 * _MIN_BYTES_PER_DMA:
        return ((0, leading),)
    n = min(_MAX_INFLIGHT_DMAS, leading, max(1, total_bytes // _MIN_BYTES_PER_DMA))
    base, rem = divmod(leading, n)
    chunks, start = [], 0
    for i in range(n):
        size = base + (1 if i < rem else 0)
        chunks.append((start, size))
        start += size
    return tuple(chunks)


def _make_dma_copy_kernel(chunks, leading):
    """Kernel: issue all HBM->HBM DMAs, then wait on all of them."""
    n = len(chunks)
    full = (n == 1 and chunks[0] == (0, leading))

    def kernel(x_ref, o_ref, sems):
        copies = []
        for i, (start, size) in enumerate(chunks):
            if full:
                cp = pltpu.make_async_copy(x_ref.at[...], o_ref.at[...], sems.at[i])
            else:
                cp = pltpu.make_async_copy(
                    x_ref.at[pl.ds(start, size)],
                    o_ref.at[pl.ds(start, size)],
                    sems.at[i],
                )
            cp.start()
            copies.append(cp)
        for cp in copies:
            cp.wait()

    return kernel, n


def rede_base_copy(x: jnp.ndarray) -> jnp.ndarray:
    """Pallas HBM->HBM DMA copy of x (for callers needing a fresh buffer)."""
    orig_shape = x.shape
    if x.size == 0:
        return x  # nothing to copy

    # 0-d -> (1,) so there is a leading axis; reshape is a metadata-only op.
    x_work = x.reshape((1,)) if x.ndim == 0 else x
    itemsize = jnp.dtype(x_work.dtype).itemsize
    total_bytes = x_work.size * itemsize

    leading = x_work.shape[0]
    chunks = _build_chunks(leading, x_work.ndim, total_bytes)
    kernel, n = _make_dma_copy_kernel(chunks, leading)

    # TODO(synk): on v7x, splitting the DMA across both TensorCores (core_map)
    # could engage both DMA queues for very large copies; single-TC multi-DMA
    # is already at/near the HBM-copy roofline for typical sizes.
    out = pl.pallas_call(
        kernel,
        out_shape=jax.ShapeDtypeStruct(x_work.shape, x_work.dtype),
        in_specs=[pl.BlockSpec(memory_space=pl.ANY)],
        out_specs=pl.BlockSpec(memory_space=pl.ANY),
        scratch_shapes=[pltpu.SemaphoreType.DMA((n,))],
        cost_estimate=pl.CostEstimate(
            flops=0, transcendentals=0, bytes_accessed=2 * total_bytes),
    )(x_work)
    return out.reshape(orig_shape)


def rede_base_forward(x: jnp.ndarray, *, force_copy: bool = False) -> jnp.ndarray:
    """RedeBase.forward: empty layer list -> identity.

    Default path returns x untouched (zero HBM traffic).  Set force_copy=True
    to run the Pallas DMA-copy kernel when a physically distinct output buffer
    is required.
    """
    if not force_copy:
        return x
    return rede_base_copy(x)


if __name__ == "__main__":
    key = jax.random.PRNGKey(0)
    # Small NCHW input consistent with a conv-style network base class.
    x = jax.random.normal(key, (2, 4, 16, 16), dtype=jnp.float32)

    # Fast path: true identity, no kernel launched.
    y_fast = rede_base_forward(x)
    assert y_fast.shape == x.shape and y_fast.dtype == x.dtype

    # Pallas DMA-copy path: run the kernel once and verify it reproduces x.
    y = rede_base_forward(x, force_copy=True)
    y = jax.block_until_ready(y)
    assert y.shape == x.shape
    assert y.dtype == x.dtype
    assert bool(jnp.array_equal(y, x)), "identity forward mismatch"

    # Ragged (non-128-aligned) shape: handled by the same single-DMA path with
    # no pad / ravel / slice glue (1x HBM traffic).
    x2 = jax.random.normal(jax.random.PRNGKey(1), (2, 3, 5, 7), dtype=jnp.float32)
    y2 = jax.block_until_ready(rede_base_forward(x2, force_copy=True))
    assert y2.shape == x2.shape and y2.dtype == x2.dtype
    assert bool(jnp.array_equal(y2, x2)), "ragged identity forward mismatch"

    print("KERNEL_OK")
</pallas_src>

<mosaic_0001>
module attributes {stable_mosaic.version = 11 : i64} {
  func.func @kernel(%arg0: memref<2x4x16x16xf32, #tpu.memory_space<any>>, %arg1: memref<2x4x16x16xf32, #tpu.memory_space<any>>, %arg2: memref<1x!tpu.dma_semaphore, #tpu.memory_space<semaphore_mem>>) attributes {dimension_semantics = [], scalar_prefetch = 0 : i64, scratch_operands = 1 : i64, tpu.core_type = #tpu.core_type<tc>} {
    %c0_i32 = arith.constant 0 : i32
    %c0_i32_0 = arith.constant 0 : i32
    %c0_i32_1 = arith.constant 0 : i32
    %c0_i32_2 = arith.constant 0 : i32
    %c0_i32_3 = arith.constant 0 : i32
    %0 = tpu.memref_slice %arg0[%c0_i32_0, %c0_i32_1, %c0_i32_2, %c0_i32_3] : memref<2x4x16x16xf32, #tpu.memory_space<any>> -> memref<2x4x16x16xf32, #tpu.memory_space<any>>
    %c0_i32_4 = arith.constant 0 : i32
    %c0_i32_5 = arith.constant 0 : i32
    %c0_i32_6 = arith.constant 0 : i32
    %c0_i32_7 = arith.constant 0 : i32
    %1 = tpu.memref_slice %arg1[%c0_i32_4, %c0_i32_5, %c0_i32_6, %c0_i32_7] : memref<2x4x16x16xf32, #tpu.memory_space<any>> -> memref<2x4x16x16xf32, #tpu.memory_space<any>>
    %2 = tpu.memref_slice %arg2[%c0_i32] : memref<1x!tpu.dma_semaphore, #tpu.memory_space<semaphore_mem>> -> memref<1x!tpu.dma_semaphore, #tpu.memory_space<semaphore_mem>>
    %3 = tpu.memref_squeeze %2 : memref<1x!tpu.dma_semaphore, #tpu.memory_space<semaphore_mem>> -> memref<!tpu.dma_semaphore, #tpu.memory_space<semaphore_mem>>
    tpu.enqueue_dma source(%0 : memref<2x4x16x16xf32, #tpu.memory_space<any>>) target(%1 : memref<2x4x16x16xf32, #tpu.memory_space<any>>) target_semaphore(%3 : memref<!tpu.dma_semaphore, #tpu.memory_space<semaphore_mem>>)
    %c0_i32_8 = arith.constant 0 : i32
    %c0_i32_9 = arith.constant 0 : i32
    %c0_i32_10 = arith.constant 0 : i32
    %c0_i32_11 = arith.constant 0 : i32
    %c0_i32_12 = arith.constant 0 : i32
    %4 = tpu.memref_slice %arg0[%c0_i32_9, %c0_i32_10, %c0_i32_11, %c0_i32_12] : memref<2x4x16x16xf32, #tpu.memory_space<any>> -> memref<2x4x16x16xf32, #tpu.memory_space<any>>
    %c0_i32_13 = arith.constant 0 : i32
    %c0_i32_14 = arith.constant 0 : i32
    %c0_i32_15 = arith.constant 0 : i32
    %c0_i32_16 = arith.constant 0 : i32
    %5 = tpu.memref_slice %arg1[%c0_i32_13, %c0_i32_14, %c0_i32_15, %c0_i32_16] : memref<2x4x16x16xf32, #tpu.memory_space<any>> -> memref<2x4x16x16xf32, #tpu.memory_space<any>>
    %6 = tpu.memref_slice %arg2[%c0_i32_8] : memref<1x!tpu.dma_semaphore, #tpu.memory_space<semaphore_mem>> -> memref<1x!tpu.dma_semaphore, #tpu.memory_space<semaphore_mem>>
    %7 = tpu.memref_squeeze %6 : memref<1x!tpu.dma_semaphore, #tpu.memory_space<semaphore_mem>> -> memref<!tpu.dma_semaphore, #tpu.memory_space<semaphore_mem>>
    tpu.wait_dma2 semaphore(%7 : memref<!tpu.dma_semaphore, #tpu.memory_space<semaphore_mem>>) src(%4 : memref<2x4x16x16xf32, #tpu.memory_space<any>>) dst(%5 : memref<2x4x16x16xf32, #tpu.memory_space<any>>)
    return
  }
}

</mosaic_0001>

<llo_original>
// kernel: tpu_custom_call.1
$region0: #{tpu_custom_call.1}
  #allocation0 [shape = 'u32[]', space=smem, size = 0x4, offset = 0x4, fixed_abs, tag = 'smem constant byte address 0x4 - core index']
  #allocation1 [shape = 'u32[72,128]{1,0:T(1,128)}', space=vmem, size = 0x9000, scoped, tag = 'internal scratch']
  #allocation2 [shape = 's32[1]{0}', space=sflag, size = 0x4, scoped, tag = 'scratch operand']
  #allocation3 [shape = 's32[]', space=sflag, size = 0x4, offset = 0, fixed_abs, tag = 'sflag constant byte address 0x0 - dummy sync flag']
  #allocation4 [shape = 'u32[0]{0}', space=smem, size = 0, offset = 0, fixed_abs, tag = 'smem constant byte address 0x0 - null']
  %s0 = inlined_call_operand.hbm [shape: f32[2,4,16,16], index: 0, kind: input, shape index: {}]
  %s1 = inlined_call_operand.hbm [shape: f32[2,4,16,16], index: 1, kind: output, shape index: {}]
  %s2 = sld [smem:[#allocation0]]
  $region2: #{tpu_custom_call.1} parent=0
    _
  %s4 = ssub.s32 1, %s2
  %s5 = scalar_select 0, %s4, %s2
  %s7 = sshll.u32 1, 14
  %s8 = sxor.u32 4294967295, %s7
  %s10 = sshll.u32 %s0, 4
  %s11 = int_to_ptr.hbm [resolvable:$true] %s10
  %s12 = sshll.u32 %s1, 4
  %s13 = int_to_ptr.hbm [resolvable:$true] %s12
  %16 = dma.general %s11, 2048, %s13, [#allocation2], [#allocation3], [#allocation4], 0, 0
  %s17 = smul.u32 2, 4
  %s18 = smul.u32 %s17, 16
  %s19 = smul.u32 %s18, 1
  %s20 = sshll.u32 %s19, 4
  %21 = dma.done [#allocation2], %s20
  %22 = vsyncmov [#allocation2]
  %s23 = vpop.sfrf %22
  %p24 = scmp.eq.s32.totalorder %s23, 0
  %p25 = pneg %p24
  %27 = shalt.err (%p25)

</llo_original>
